<compile_context>
chip_gen: v7x
topology: tpu7x:2x2x1
jax: 0.10.0
libtpu: 0.0.40
codegen_flags: <defaults>
</compile_context>

<pallas_src>
import functools

import numpy as np
import jax
import jax.numpy as jnp
from jax.experimental import pallas as pl
from jax.experimental.pallas import tpu as pltpu


def _segment_indices(nT: int, n_segments: int):
    # Exact replica of the PyTorch module's index computation (including
    # Python's round-half-to-even behaviour).
    t_vec = np.linspace(1, nT, n_segments + 1)
    t_vec = [int(round(x)) - 1 for x in t_vec]
    return t_vec[:-1]  # list of python ints, length n_segments


def _round_up(a: int, m: int) -> int:
    return ((a + m - 1) // m) * m


def _sp_kernel(x_hbm, out_ref, sems, *, t_idx, b_tile, n_full, b_rem):
    """Gather n_segments time rows for one batch tile via strided DMAs.

    x_hbm  : (B, T, Dk) ref left in HBM (memory_space=pl.ANY).
    out_ref: (b_tile, n_segments, Dk) VMEM output block for this batch tile.
    sems   : (n_segments,) DMA-completion semaphores.
    """
    pid = pl.program_id(0)
    b0 = pid * b_tile

    def gather(rows):
        copies = []
        # n_segments is a small compile-time constant: static unroll so all
        # gather DMAs are in flight at once, then drain.
        for s, t in enumerate(t_idx):
            cp = pltpu.make_async_copy(
                x_hbm.at[pl.ds(b0, rows), pl.ds(t, 1), :],
                out_ref.at[pl.ds(0, rows), pl.ds(s, 1), :],
                sems.at[s],
            )
            cp.start()
            copies.append(cp)
        for cp in copies:
            cp.wait()

    if b_rem == 0:                       # static: batch divides evenly
        gather(b_tile)
    else:
        @pl.when(pid < n_full)           # full batch tiles
        def _():
            gather(b_tile)

        @pl.when(pid == n_full)          # trailing partial tile (b_rem rows)
        def _():
            gather(b_rem)


def sp_forward(x: jax.Array, n_segments: int, *, b_tile=None) -> jax.Array:
    """Pallas equivalent of sp(n_segments).forward(x) for x of shape (B, T, D)."""
    B, T, D = x.shape
    t_idx = _segment_indices(T, n_segments)          # compile-time Python ints
    itemsize = x.dtype.itemsize

    # --- Sub-32-bit dtypes: pair lanes into 32-bit words so every segment DMA
    # --- writes whole 32-bit sublane words of the packed VMEM output block.
    pack = 1
    if itemsize < 4 and (D * itemsize) % 4 == 0:
        pack = 4 // itemsize
        xk = jax.lax.bitcast_convert_type(
            x.reshape(B, T, D // pack, pack), jnp.uint32)
    else:
        # TODO(synk): sub-32-bit dtypes whose row size is not a multiple of 4
        # bytes fall through to direct packed-sublane DMAs, which some Mosaic
        # versions may reject; pad D upstream in that case.
        xk = x
    _, _, Dk = xk.shape
    k_itemsize = xk.dtype.itemsize

    # --- VMEM footprint of one output block (incl. sublane/lane padding). ---
    sub_mult = 8 * max(1, 4 // k_itemsize)           # 8 (32-bit), 16 (bf16), 32 (i8)
    block_bytes_per_batch_row = (_round_up(n_segments, sub_mult)
                                 * _round_up(Dk, 128) * k_itemsize)

    # --- Generation-aware VMEM budget (v7x: 64 MiB, v5e/v6e: 128 MiB). ---
    try:
        vmem_cap = int(pltpu.get_tpu_info().vmem_capacity_bytes)
    except Exception:
        vmem_cap = 64 * 1024 * 1024                  # conservative (v7x) fallback
    block_budget = vmem_cap // 4                     # for double-buffered out blocks

    if b_tile is None:
        b_tile = max(1, block_budget // (2 * block_bytes_per_batch_row))
        b_tile = min(b_tile, B)
        if B >= 2:
            # Keep >= 2 batch tiles so v7x can shard the grid across its 2 TCs.
            b_tile = min(b_tile, (B + 1) // 2)
    b_tile = int(max(1, min(b_tile, B)))

    num_tiles = (B + b_tile - 1) // b_tile
    n_full = B // b_tile
    b_rem = B - n_full * b_tile

    vmem_limit = int(min(vmem_cap * 3 // 4,
                         max(16 * 1024 * 1024,
                             2 * b_tile * block_bytes_per_batch_row + (4 << 20))))

    kernel = functools.partial(_sp_kernel, t_idx=t_idx, b_tile=b_tile,
                               n_full=n_full, b_rem=b_rem)

    out_k = pl.pallas_call(
        kernel,
        out_shape=jax.ShapeDtypeStruct((B, n_segments, Dk), xk.dtype),
        grid_spec=pltpu.PrefetchScalarGridSpec(
            num_scalar_prefetch=0,
            grid=(num_tiles,),
            in_specs=[pl.BlockSpec(memory_space=pl.ANY)],     # stays in HBM
            out_specs=pl.BlockSpec((b_tile, n_segments, Dk),
                                   lambda i: (i, 0, 0)),
            scratch_shapes=[pltpu.SemaphoreType.DMA((n_segments,))],
        ),
        compiler_params=pltpu.CompilerParams(
            dimension_semantics=("parallel",),   # disjoint output blocks
            vmem_limit_bytes=vmem_limit,
        ),
    )(xk)

    if pack > 1:
        out = jax.lax.bitcast_convert_type(out_k, x.dtype)
        out = out.reshape(B, n_segments, D)
    else:
        out = out_k
    return out


if __name__ == "__main__":
    key = jax.random.PRNGKey(0)
    k1, k2 = jax.random.split(key)

    # Test 1: module-scale example (B=2, T=16, D=128, n_segments=4), f32.
    B, T, D, n_seg = 2, 16, 128, 4
    x1 = jax.random.normal(k1, (B, T, D), dtype=jnp.float32)
    out1 = jax.block_until_ready(sp_forward(x1, n_seg))
    ref1 = np.asarray(x1)[:, _segment_indices(T, n_seg)]
    assert out1.shape == (B, n_seg, D)
    assert out1.dtype == x1.dtype
    np.testing.assert_array_equal(np.asarray(out1), ref1)

    # Test 2: bf16, batch not divisible by the tile -> exercises the 32-bit
    # lane-pairing path, the multi-tile grid and the trailing partial tile.
    B2, T2, D2, n_seg2 = 5, 10, 256, 3
    x2 = jax.random.normal(k2, (B2, T2, D2), dtype=jnp.float32).astype(jnp.bfloat16)
    out2 = jax.block_until_ready(sp_forward(x2, n_seg2, b_tile=2))
    assert out2.shape == (B2, n_seg2, D2)
    assert out2.dtype == x2.dtype
    ref2 = np.asarray(x2.astype(jnp.float32))[:, _segment_indices(T2, n_seg2)]
    np.testing.assert_array_equal(np.asarray(out2.astype(jnp.float32)), ref2)

    print("KERNEL_OK")
</pallas_src>

<mosaic_0001>
module attributes {stable_mosaic.version = 11 : i64} {
  func.func @_sp_kernel(%arg0: i32, %arg1: memref<2x16x128xf32, #tpu.memory_space<any>>, %arg2: memref<1x4x128xf32, #tpu.memory_space<vmem>>, %arg3: memref<4x!tpu.dma_semaphore, #tpu.memory_space<semaphore_mem>>) attributes {dimension_semantics = [#tpu.dimension_semantics<parallel>], iteration_bounds = array<i64: 2>, scalar_prefetch = 0 : i64, scratch_operands = 1 : i64, tpu.core_type = #tpu.core_type<tc>, window_params = [{}, {transform_indices = @transform_1, window_bounds = array<i64: 1, 4, 128>}]} {
    %c1_i32 = arith.constant 1 : i32
    %0 = arith.muli %arg0, %c1_i32 : i32
    %c0_i32 = arith.constant 0 : i32
    %c0_i32_0 = arith.constant 0 : i32
    %c0_i32_1 = arith.constant 0 : i32
    %1 = tpu.memref_slice %arg1[%0, %c0_i32_0, %c0_i32_1] : memref<2x16x128xf32, #tpu.memory_space<any>> -> memref<1x1x128xf32, #tpu.memory_space<any>>
    %c0_i32_2 = arith.constant 0 : i32
    %c0_i32_3 = arith.constant 0 : i32
    %c0_i32_4 = arith.constant 0 : i32
    %2 = tpu.memref_slice %arg2[%c0_i32_2, %c0_i32_3, %c0_i32_4] : memref<1x4x128xf32, #tpu.memory_space<vmem>> -> memref<1x1x128xf32, #tpu.memory_space<vmem>>
    %3 = tpu.memref_slice %arg3[%c0_i32] : memref<4x!tpu.dma_semaphore, #tpu.memory_space<semaphore_mem>> -> memref<1x!tpu.dma_semaphore, #tpu.memory_space<semaphore_mem>>
    %4 = tpu.memref_squeeze %3 : memref<1x!tpu.dma_semaphore, #tpu.memory_space<semaphore_mem>> -> memref<!tpu.dma_semaphore, #tpu.memory_space<semaphore_mem>>
    tpu.enqueue_dma source(%1 : memref<1x1x128xf32, #tpu.memory_space<any>>) target(%2 : memref<1x1x128xf32, #tpu.memory_space<vmem>>) target_semaphore(%4 : memref<!tpu.dma_semaphore, #tpu.memory_space<semaphore_mem>>)
    %c1_i32_5 = arith.constant 1 : i32
    %c4_i32 = arith.constant 4 : i32
    %c0_i32_6 = arith.constant 0 : i32
    %5 = tpu.memref_slice %arg1[%0, %c4_i32, %c0_i32_6] : memref<2x16x128xf32, #tpu.memory_space<any>> -> memref<1x1x128xf32, #tpu.memory_space<any>>
    %c0_i32_7 = arith.constant 0 : i32
    %c1_i32_8 = arith.constant 1 : i32
    %c0_i32_9 = arith.constant 0 : i32
    %6 = tpu.memref_slice %arg2[%c0_i32_7, %c1_i32_8, %c0_i32_9] : memref<1x4x128xf32, #tpu.memory_space<vmem>> -> memref<1x1x128xf32, #tpu.memory_space<vmem>>
    %7 = tpu.memref_slice %arg3[%c1_i32_5] : memref<4x!tpu.dma_semaphore, #tpu.memory_space<semaphore_mem>> -> memref<1x!tpu.dma_semaphore, #tpu.memory_space<semaphore_mem>>
    %8 = tpu.memref_squeeze %7 : memref<1x!tpu.dma_semaphore, #tpu.memory_space<semaphore_mem>> -> memref<!tpu.dma_semaphore, #tpu.memory_space<semaphore_mem>>
    tpu.enqueue_dma source(%5 : memref<1x1x128xf32, #tpu.memory_space<any>>) target(%6 : memref<1x1x128xf32, #tpu.memory_space<vmem>>) target_semaphore(%8 : memref<!tpu.dma_semaphore, #tpu.memory_space<semaphore_mem>>)
    %c2_i32 = arith.constant 2 : i32
    %c7_i32 = arith.constant 7 : i32
    %c0_i32_10 = arith.constant 0 : i32
    %9 = tpu.memref_slice %arg1[%0, %c7_i32, %c0_i32_10] : memref<2x16x128xf32, #tpu.memory_space<any>> -> memref<1x1x128xf32, #tpu.memory_space<any>>
    %c0_i32_11 = arith.constant 0 : i32
    %c2_i32_12 = arith.constant 2 : i32
    %c0_i32_13 = arith.constant 0 : i32
    %10 = tpu.memref_slice %arg2[%c0_i32_11, %c2_i32_12, %c0_i32_13] : memref<1x4x128xf32, #tpu.memory_space<vmem>> -> memref<1x1x128xf32, #tpu.memory_space<vmem>>
    %11 = tpu.memref_slice %arg3[%c2_i32] : memref<4x!tpu.dma_semaphore, #tpu.memory_space<semaphore_mem>> -> memref<1x!tpu.dma_semaphore, #tpu.memory_space<semaphore_mem>>
    %12 = tpu.memref_squeeze %11 : memref<1x!tpu.dma_semaphore, #tpu.memory_space<semaphore_mem>> -> memref<!tpu.dma_semaphore, #tpu.memory_space<semaphore_mem>>
    tpu.enqueue_dma source(%9 : memref<1x1x128xf32, #tpu.memory_space<any>>) target(%10 : memref<1x1x128xf32, #tpu.memory_space<vmem>>) target_semaphore(%12 : memref<!tpu.dma_semaphore, #tpu.memory_space<semaphore_mem>>)
    %c3_i32 = arith.constant 3 : i32
    %c11_i32 = arith.constant 11 : i32
    %c0_i32_14 = arith.constant 0 : i32
    %13 = tpu.memref_slice %arg1[%0, %c11_i32, %c0_i32_14] : memref<2x16x128xf32, #tpu.memory_space<any>> -> memref<1x1x128xf32, #tpu.memory_space<any>>
    %c0_i32_15 = arith.constant 0 : i32
    %c3_i32_16 = arith.constant 3 : i32
    %c0_i32_17 = arith.constant 0 : i32
    %14 = tpu.memref_slice %arg2[%c0_i32_15, %c3_i32_16, %c0_i32_17] : memref<1x4x128xf32, #tpu.memory_space<vmem>> -> memref<1x1x128xf32, #tpu.memory_space<vmem>>
    %15 = tpu.memref_slice %arg3[%c3_i32] : memref<4x!tpu.dma_semaphore, #tpu.memory_space<semaphore_mem>> -> memref<1x!tpu.dma_semaphore, #tpu.memory_space<semaphore_mem>>
    %16 = tpu.memref_squeeze %15 : memref<1x!tpu.dma_semaphore, #tpu.memory_space<semaphore_mem>> -> memref<!tpu.dma_semaphore, #tpu.memory_space<semaphore_mem>>
    tpu.enqueue_dma source(%13 : memref<1x1x128xf32, #tpu.memory_space<any>>) target(%14 : memref<1x1x128xf32, #tpu.memory_space<vmem>>) target_semaphore(%16 : memref<!tpu.dma_semaphore, #tpu.memory_space<semaphore_mem>>)
    %c0_i32_18 = arith.constant 0 : i32
    %c0_i32_19 = arith.constant 0 : i32
    %c0_i32_20 = arith.constant 0 : i32
    %17 = tpu.memref_slice %arg1[%0, %c0_i32_19, %c0_i32_20] : memref<2x16x128xf32, #tpu.memory_space<any>> -> memref<1x1x128xf32, #tpu.memory_space<any>>
    %c0_i32_21 = arith.constant 0 : i32
    %c0_i32_22 = arith.constant 0 : i32
    %c0_i32_23 = arith.constant 0 : i32
    %18 = tpu.memref_slice %arg2[%c0_i32_21, %c0_i32_22, %c0_i32_23] : memref<1x4x128xf32, #tpu.memory_space<vmem>> -> memref<1x1x128xf32, #tpu.memory_space<vmem>>
    %19 = tpu.memref_slice %arg3[%c0_i32_18] : memref<4x!tpu.dma_semaphore, #tpu.memory_space<semaphore_mem>> -> memref<1x!tpu.dma_semaphore, #tpu.memory_space<semaphore_mem>>
    %20 = tpu.memref_squeeze %19 : memref<1x!tpu.dma_semaphore, #tpu.memory_space<semaphore_mem>> -> memref<!tpu.dma_semaphore, #tpu.memory_space<semaphore_mem>>
    tpu.wait_dma2 semaphore(%20 : memref<!tpu.dma_semaphore, #tpu.memory_space<semaphore_mem>>) src(%17 : memref<1x1x128xf32, #tpu.memory_space<any>>) dst(%18 : memref<1x1x128xf32, #tpu.memory_space<vmem>>)
    %c1_i32_24 = arith.constant 1 : i32
    %c4_i32_25 = arith.constant 4 : i32
    %c0_i32_26 = arith.constant 0 : i32
    %21 = tpu.memref_slice %arg1[%0, %c4_i32_25, %c0_i32_26] : memref<2x16x128xf32, #tpu.memory_space<any>> -> memref<1x1x128xf32, #tpu.memory_space<any>>
    %c0_i32_27 = arith.constant 0 : i32
    %c1_i32_28 = arith.constant 1 : i32
    %c0_i32_29 = arith.constant 0 : i32
    %22 = tpu.memref_slice %arg2[%c0_i32_27, %c1_i32_28, %c0_i32_29] : memref<1x4x128xf32, #tpu.memory_space<vmem>> -> memref<1x1x128xf32, #tpu.memory_space<vmem>>
    %23 = tpu.memref_slice %arg3[%c1_i32_24] : memref<4x!tpu.dma_semaphore, #tpu.memory_space<semaphore_mem>> -> memref<1x!tpu.dma_semaphore, #tpu.memory_space<semaphore_mem>>
    %24 = tpu.memref_squeeze %23 : memref<1x!tpu.dma_semaphore, #tpu.memory_space<semaphore_mem>> -> memref<!tpu.dma_semaphore, #tpu.memory_space<semaphore_mem>>
    tpu.wait_dma2 semaphore(%24 : memref<!tpu.dma_semaphore, #tpu.memory_space<semaphore_mem>>) src(%21 : memref<1x1x128xf32, #tpu.memory_space<any>>) dst(%22 : memref<1x1x128xf32, #tpu.memory_space<vmem>>)
    %c2_i32_30 = arith.constant 2 : i32
    %c7_i32_31 = arith.constant 7 : i32
    %c0_i32_32 = arith.constant 0 : i32
    %25 = tpu.memref_slice %arg1[%0, %c7_i32_31, %c0_i32_32] : memref<2x16x128xf32, #tpu.memory_space<any>> -> memref<1x1x128xf32, #tpu.memory_space<any>>
    %c0_i32_33 = arith.constant 0 : i32
    %c2_i32_34 = arith.constant 2 : i32
    %c0_i32_35 = arith.constant 0 : i32
    %26 = tpu.memref_slice %arg2[%c0_i32_33, %c2_i32_34, %c0_i32_35] : memref<1x4x128xf32, #tpu.memory_space<vmem>> -> memref<1x1x128xf32, #tpu.memory_space<vmem>>
    %27 = tpu.memref_slice %arg3[%c2_i32_30] : memref<4x!tpu.dma_semaphore, #tpu.memory_space<semaphore_mem>> -> memref<1x!tpu.dma_semaphore, #tpu.memory_space<semaphore_mem>>
    %28 = tpu.memref_squeeze %27 : memref<1x!tpu.dma_semaphore, #tpu.memory_space<semaphore_mem>> -> memref<!tpu.dma_semaphore, #tpu.memory_space<semaphore_mem>>
    tpu.wait_dma2 semaphore(%28 : memref<!tpu.dma_semaphore, #tpu.memory_space<semaphore_mem>>) src(%25 : memref<1x1x128xf32, #tpu.memory_space<any>>) dst(%26 : memref<1x1x128xf32, #tpu.memory_space<vmem>>)
    %c3_i32_36 = arith.constant 3 : i32
    %c11_i32_37 = arith.constant 11 : i32
    %c0_i32_38 = arith.constant 0 : i32
    %29 = tpu.memref_slice %arg1[%0, %c11_i32_37, %c0_i32_38] : memref<2x16x128xf32, #tpu.memory_space<any>> -> memref<1x1x128xf32, #tpu.memory_space<any>>
    %c0_i32_39 = arith.constant 0 : i32
    %c3_i32_40 = arith.constant 3 : i32
    %c0_i32_41 = arith.constant 0 : i32
    %30 = tpu.memref_slice %arg2[%c0_i32_39, %c3_i32_40, %c0_i32_41] : memref<1x4x128xf32, #tpu.memory_space<vmem>> -> memref<1x1x128xf32, #tpu.memory_space<vmem>>
    %31 = tpu.memref_slice %arg3[%c3_i32_36] : memref<4x!tpu.dma_semaphore, #tpu.memory_space<semaphore_mem>> -> memref<1x!tpu.dma_semaphore, #tpu.memory_space<semaphore_mem>>
    %32 = tpu.memref_squeeze %31 : memref<1x!tpu.dma_semaphore, #tpu.memory_space<semaphore_mem>> -> memref<!tpu.dma_semaphore, #tpu.memory_space<semaphore_mem>>
    tpu.wait_dma2 semaphore(%32 : memref<!tpu.dma_semaphore, #tpu.memory_space<semaphore_mem>>) src(%29 : memref<1x1x128xf32, #tpu.memory_space<any>>) dst(%30 : memref<1x1x128xf32, #tpu.memory_space<vmem>>)
    return
  }
  func.func @transform_1(%arg0: i32) -> (i32, i32, i32) {
    %c0_i32 = arith.constant 0 : i32
    %c0_i32_0 = arith.constant 0 : i32
    %c0_i32_1 = arith.constant 0 : i32
    return %arg0, %c0_i32, %c0_i32_0 : i32, i32, i32
  }
}

</mosaic_0001>

<llo_original>
// kernel: tpu_custom_call.1
$region0: #{tpu_custom_call.1}
  #allocation0 [shape = 'u32[]', space=smem, size = 0x4, offset = 0x4, fixed_abs, tag = 'smem constant byte address 0x4 - core index']
  #allocation1 [shape = 'u32[144,128]{1,0:T(1,128)}', space=vmem, size = 0x12000, scoped, tag = 'internal scratch']
  #allocation2 [shape = 's32[4]{0}', space=sflag, size = 0x10, scoped, tag = 'scratch operand']
  #allocation5 [shape = 's32[]', space=sflag, size = 0x4, offset = 0, fixed_abs, tag = 'sflag constant byte address 0x0 - dummy sync flag']
  #allocation6 [shape = 's32[]', space=sflag, size = 0x4, offset = 0, fixed_abs, tag = 'sflag constant byte address 0x0 - dummy sync flag']
  #allocation7 [shape = 'u32[]', space=smem, size = 0x4, offset = 0x44, fixed_abs, tag = 'smem constant byte address 0x44 - assertion arg 0']
  #allocation8 [shape = 'u32[]', space=smem, size = 0x4, offset = 0x48, fixed_abs, tag = 'smem constant byte address 0x48 - assertion arg 1']
  #allocation9 [shape = 's32[]', space=sflag, size = 0x4, offset = 0, fixed_abs, tag = 'sflag constant byte address 0x0 - dummy sync flag']
  #allocation10 [shape = 's32[]', space=sflag, size = 0x4, offset = 0, fixed_abs, tag = 'sflag constant byte address 0x0 - dummy sync flag']
  #allocation11 [shape = 's32[]', space=sflag, size = 0x4, offset = 0, fixed_abs, tag = 'sflag constant byte address 0x0 - dummy sync flag']
  #allocation12 [shape = 's32[]', space=sflag, size = 0x4, offset = 0, fixed_abs, tag = 'sflag constant byte address 0x0 - dummy sync flag']
  #allocation13 [shape = 's32[]', space=sflag, size = 0x4, offset = 0, fixed_abs, tag = 'sflag constant byte address 0x0 - dummy sync flag']
  #allocation14 [shape = 's32[]', space=sflag, size = 0x4, offset = 0, fixed_abs, tag = 'sflag constant byte address 0x0 - dummy sync flag']
  %s0 = inlined_call_operand.hbm [shape: f32[2,16,128], index: 0, kind: input, shape index: {}]
  %s1 = inlined_call_operand.hbm [shape: f32[2,4,128], index: 1, kind: output, shape index: {}]
  %s2 = sld [smem:[#allocation0]]
  $region41: #{tpu_custom_call.1} parent=0
    _
  %s4 = ssub.s32 1, %s2
  %s5 = scalar_select 0, %s4, %s2
  $region1: #{tpu_custom_call.1} parent=0
    #allocation3 [shape = 'u8[4096]{0}', space=vmem, size = 0x1000, scoped, tag = 'output window, operand 0']
    #allocation4 [shape = 's32[2]{0}', space=sflag, size = 0x8, scoped, tag = 'scoped memory for tpu_custom_call.1']
    %6 = vsyncpa [#allocation4], 0
    %s7 = scalar_lea.sflag [#allocation4], 1
    %8 = vsyncpa %s7, 0
    loop: start=0, step=1, limit=3
    $region2: #{tpu_custom_call.1} parent=1 // loop_pre_header
      _
    $region3: #{tpu_custom_call.1} parent=1 // loop_header
      %s10 = sphi 0, %s14
      %p11 = scmp.ge.s32.totalorder %s10, 3
      %s19 = sphi 0, %s21
      %s22 = sphi 0, %s19
      %s32 = sphi 0, %s22
    $region4: #{tpu_custom_call.1} parent=1 // loop_header_branch
      %13 = sbr.rel (%p11) target = $region8
    $region5: #{tpu_custom_call.1} parent=1 // loop_body
      %s15 = ssub.s32 %s10, 1
      %s16 = sadd.s32 %s10, 1
      %s17 = ssub.s32 %s10, %s16
      %p18 = scmp.eq.s32.totalorder %s17, 0
      %s20 = sadd.s32 %s19, 1
      %s21 = scalar_select %p18, %s19, %s20
      %p23 = pneg %p18
      %p24 = scmp.eq.s32.totalorder %s10, 1
      %p25 = por %p23, %p24
      %p26 = scmp.ne.s32.totalorder %s19, %s22
      %p27 = scmp.eq.s32.totalorder %s10, 0
      %p28 = por %p26, %p27
      %p29 = scmp.ne.s32.totalorder %s19, %s22
      %p30 = scmp.eq.s32.totalorder %s15, 1
      %p31 = por %p29, %p30
      %p33 = scmp.ne.s32.totalorder %s22, %s32
      %p34 = scmp.eq.s32.totalorder %s15, 0
      %p35 = por %p33, %p34
      %p36 = scmp.lt.s32.totalorder %s10, 2
      // Predicated region
      $region9: #{tpu_custom_call.1} parent=5 // pred_check
        %p37 = pneg %p36
      $region10: #{tpu_custom_call.1} parent=5 // pred_check_branch
        %39 = sbr.rel (%p37) target = $region12
      $region11: #{tpu_custom_call.1} parent=5 // pred_region
        %p40 = pneg %p28
        %p41 = pneg %p25
        %s42 = sand.u32 %s19, 1
        %s43 = scalar_lea.sflag [#allocation4], %s42
        %s44 = sand.u32 %s19, 1
        %s45 = smul.addr %s44, 4
        %s46 = scalar_lea.vmem [#allocation3], %s45
        %s47 = smul.u32 %s10, 16
        %s48 = smul.addr %s47, 16
        %s49 = scalar_lea.hbm %s0, %s48
        // Predicated region
        $region13: #{tpu_custom_call.1} parent=11 // pred_check
          _
        $region14: #{tpu_custom_call.1} parent=11 // pred_check_branch
          %51 = sbr.rel target = $region16
        $region15: #{tpu_custom_call.1} parent=11 // pred_region
          %52 = sst [smem:[#allocation7]] [#allocation6]
          %53 = sst [smem:[#allocation8]] [#allocation5]
        $region16: #{tpu_custom_call.1} parent=11 // pred_fallthru
          _
        %55 = shalt.err (0)
        %s57 = sshll.u32 %s46, 4
        %s58 = int_to_ptr.vmem [resolvable:$true] %s57
        %60 = dma.hbm_to_vmem [thread:$0]  %s49, 16, %s58, [#allocation2]
        %s61 = sadd.s32 4, %s47
        %s62 = smul.addr %s61, 16
        %s63 = scalar_lea.hbm %s0, %s62
        %s64 = scalar_lea.vmem %s46, 1 [#allocation3]
        %s65 = scalar_lea.sflag [#allocation2], 1
        // Predicated region
        $region17: #{tpu_custom_call.1} parent=11 // pred_check
          _
        $region18: #{tpu_custom_call.1} parent=11 // pred_check_branch
          %67 = sbr.rel target = $region20
        $region19: #{tpu_custom_call.1} parent=11 // pred_region
          %68 = sst [smem:[#allocation7]] [#allocation10]
          %69 = sst [smem:[#allocation8]] [#allocation9]
        $region20: #{tpu_custom_call.1} parent=11 // pred_fallthru
          _
        %71 = shalt.err (0)
        %s73 = sshll.u32 %s64, 4
        %s74 = int_to_ptr.vmem [resolvable:$true] %s73
        %76 = dma.hbm_to_vmem [thread:$0]  %s63, 16, %s74, %s65
        %s77 = sadd.s32 7, %s47
        %s78 = smul.addr %s77, 16
        %s79 = scalar_lea.hbm %s0, %s78
        %s80 = scalar_lea.vmem %s46, 2 [#allocation3]
        %s81 = scalar_lea.sflag [#allocation2], 2
        // Predicated region
        $region21: #{tpu_custom_call.1} parent=11 // pred_check
          _
        $region22: #{tpu_custom_call.1} parent=11 // pred_check_branch
          %83 = sbr.rel target = $region24
        $region23: #{tpu_custom_call.1} parent=11 // pred_region
          %84 = sst [smem:[#allocation7]] [#allocation12]
          %85 = sst [smem:[#allocation8]] [#allocation11]
        $region24: #{tpu_custom_call.1} parent=11 // pred_fallthru
          _
        %87 = shalt.err (0)
        %s89 = sshll.u32 %s80, 4
        %s90 = int_to_ptr.vmem [resolvable:$true] %s89
        %92 = dma.hbm_to_vmem [thread:$0]  %s79, 16, %s90, %s81
        %s93 = sadd.s32 11, %s47
        %s94 = smul.addr %s93, 16
        %s95 = scalar_lea.hbm %s0, %s94
        %s96 = scalar_lea.vmem %s46, 3 [#allocation3]
        %s97 = scalar_lea.sflag [#allocation2], 3
        // Predicated region
        $region25: #{tpu_custom_call.1} parent=11 // pred_check
          _
        $region26: #{tpu_custom_call.1} parent=11 // pred_check_branch
          %99 = sbr.rel target = $region28
        $region27: #{tpu_custom_call.1} parent=11 // pred_region
          %100 = sst [smem:[#allocation7]] [#allocation14]
          %101 = sst [smem:[#allocation8]] [#allocation13]
        $region28: #{tpu_custom_call.1} parent=11 // pred_fallthru
          _
        %103 = shalt.err (0)
        %s105 = sshll.u32 %s96, 4
        %s106 = int_to_ptr.vmem [resolvable:$true] %s105
        %108 = dma.hbm_to_vmem [thread:$0]  %s95, 16, %s106, %s97
        %s109 = smul.u32 1, 1
        %s110 = smul.u32 %s109, 1
        %s111 = sshll.u32 %s110, 4
        %112 = dma.done [#allocation2], %s111
        %s113 = sshll.u32 %s110, 4
        %114 = dma.done %s65, %s113
        %s115 = sshll.u32 %s110, 4
        %116 = dma.done %s81, %s115
        %s117 = sshll.u32 %s110, 4
        %118 = dma.done %s97, %s117
        %s119 = sand.u32 %s19, 1
        %s120 = scalar_lea.sflag [#allocation4], %s119
        %s121 = sand.u32 %s19, 1
        %s122 = smul.addr %s121, 4
        %s123 = scalar_lea.vmem [#allocation3], %s122
        // Predicated region
        $region29: #{tpu_custom_call.1} parent=11 // pred_check
          %p124 = pneg %p25
        $region30: #{tpu_custom_call.1} parent=11 // pred_check_branch
          %126 = sbr.rel (%p124) target = $region32
        $region31: #{tpu_custom_call.1} parent=11 // pred_region
          %s128 = ssub.s32 64, 64
          %129 = vsyncadd %s120, %s128
          %s130 = smul.addr %s10, 64
          %s131 = scalar_lea.hbm %s1, %s130
          %s133 = sshll.u32 %s123, 4
          %s134 = int_to_ptr.vmem [resolvable:$true] %s133
          %136 = dma.vmem_to_hbm [thread:$0]  %s134, 64, %s131, %s120
        $region32: #{tpu_custom_call.1} parent=11 // pred_fallthru
          _
      $region12: #{tpu_custom_call.1} parent=5 // pred_fallthru
        _
      %p137 = scmp.le.s32.totalorder 1, %s10
      // Predicated region
      $region33: #{tpu_custom_call.1} parent=5 // pred_check
        %p138 = pneg %p137
      $region34: #{tpu_custom_call.1} parent=5 // pred_check_branch
        %140 = sbr.rel (%p138) target = $region36
      $region35: #{tpu_custom_call.1} parent=5 // pred_region
        %s141 = ssub.s32 %s10, 1
        // Predicated region
        $region37: #{tpu_custom_call.1} parent=35 // pred_check
          %p142 = pneg %p31
        $region38: #{tpu_custom_call.1} parent=35 // pred_check_branch
          %144 = sbr.rel (%p142) target = $region40
        $region39: #{tpu_custom_call.1} parent=35 // pred_region
          %s145 = sand.u32 %s22, 1
          %s146 = scalar_lea.sflag [#allocation4], %s145
          %s147 = sand.u32 %s22, 1
          %s148 = smul.addr %s147, 4
          %s149 = scalar_lea.vmem [#allocation3], %s148
          %150 = dma.done %s146, 64
        $region40: #{tpu_custom_call.1} parent=35 // pred_fallthru
          _
      $region36: #{tpu_custom_call.1} parent=5 // pred_fallthru
        _
    $region6: #{tpu_custom_call.1} parent=1 // loop_footer
      %s14 = sadd.s32 1, %s10
    $region7: #{tpu_custom_call.1} parent=1 // loop_footer_branch
      %9 = sbr.rel target = $region3
    $region8: #{tpu_custom_call.1} parent=1 // loop_exit
      _
    %151 = vsyncpa [#allocation4], 1
    %s152 = scalar_lea.sflag [#allocation4], 1
    %153 = vsyncpa %s152, 1
  %154 = vsyncmov [#allocation2]
  %s155 = vpop.sfrf %154
  %p156 = scmp.eq.s32.totalorder %s155, 0
  %p157 = pneg %p156
  %159 = shalt.err (%p157)
  %s160 = scalar_lea.sflag [#allocation2], 1
  %161 = vsyncmov %s160
  %s162 = vpop.sfrf %161
  %p163 = scmp.eq.s32.totalorder %s162, 0
  %p164 = pneg %p163
  %166 = shalt.err (%p164)
  %s167 = scalar_lea.sflag [#allocation2], 2
  %168 = vsyncmov %s167
  %s169 = vpop.sfrf %168
  %p170 = scmp.eq.s32.totalorder %s169, 0
  %p171 = pneg %p170
  %173 = shalt.err (%p171)
  %s174 = scalar_lea.sflag [#allocation2], 3
  %175 = vsyncmov %s174
  %s176 = vpop.sfrf %175
  %p177 = scmp.eq.s32.totalorder %s176, 0
  %p178 = pneg %p177
  %180 = shalt.err (%p178)

</llo_original>
